<compile_context>
chip_gen: v6e
topology: v6e:2x2x1
jax: 0.10.0
libtpu: 0.0.40
codegen_flags: <defaults>
</compile_context>

<pallas_src>
import jax
import jax.numpy as jnp
from jax.experimental import pallas as pl
from jax.experimental.pallas import tpu as pltpu


def _fused_mlp_kernel(x_ref, w_ref, c_ref, o_ref):
    # x_ref: (TB, F) f32   w_ref: (F, Npad) bf16   c_ref: (1, Npad) f32
    # o_ref: (TB, Npad) f32 -- lane-dense (Npad multiple of 128) unmasked store
    x = x_ref[...].astype(jnp.bfloat16)               # bf16 MXU operand
    y = jnp.dot(x, w_ref[...],
                preferred_element_type=jnp.float32)   # f32 accumulation
    o_ref[...] = y + c_ref[...]                       # f32 VPU bias add


def net_forward(x, w1, b1, w2, b2, *, block_b=256):
    """Forward pass of Net (two Linear layers, no activation).

    x  : (B, n_feature)          float32
    w1 : (n_feature, n_hidden)   -- transposed PyTorch hidden.weight
    b1 : (1, n_hidden)
    w2 : (n_hidden, n_output)    -- transposed PyTorch predict.weight
    b2 : (1, n_output)
    returns (B, n_output) float32
    """
    B, F = x.shape
    O = w2.shape[1]

    # --- algebraic fusion (exact because there is no nonlinearity between the
    #     two Linear layers; revert if an activation is ever added back) ---
    w_fused = jnp.dot(w1, w2)                  # (F, O)  f32
    c_fused = jnp.dot(b1, w2) + b2             # (1, O)  f32

    # --- lane-dense padding of the output/N dimension to a multiple of 128 ---
    n_pad = max(128, ((O + 127) // 128) * 128)
    w_pad = (jnp.zeros((F, n_pad), jnp.float32)
             .at[:, :O].set(w_fused)).astype(jnp.bfloat16)
    c_pad = jnp.zeros((1, n_pad), jnp.float32).at[:, :O].set(c_fused)

    # --- batch tiling: TB rows per grid step (multiple of 8), pad B up ---
    tb = max(8, min(block_b, ((B + 7) // 8) * 8))
    b_pad = ((B + tb - 1) // tb) * tb
    x_pad = x if b_pad == B else jnp.zeros((b_pad, F), x.dtype).at[:B, :].set(x)

    grid = (b_pad // tb,)
    cost = pl.CostEstimate(
        flops=2 * b_pad * F * n_pad,
        transcendentals=0,
        bytes_accessed=int(x_pad.size * 4 + w_pad.size * 2
                           + c_pad.size * 4 + b_pad * n_pad * 4),
    )

    out = pl.pallas_call(
        _fused_mlp_kernel,
        out_shape=jax.ShapeDtypeStruct((b_pad, n_pad), jnp.float32),
        grid=grid,
        in_specs=[
            # x tile moves with the batch-grid index; weights/bias stay resident
            pl.BlockSpec((tb, F), lambda i: (i, 0)),
            pl.BlockSpec((F, n_pad), lambda i: (0, 0)),
            pl.BlockSpec((1, n_pad), lambda i: (0, 0)),
        ],
        out_specs=pl.BlockSpec((tb, n_pad), lambda i: (i, 0)),
        compiler_params=pltpu.CompilerParams(
            dimension_semantics=("parallel",)),
        cost_estimate=cost,
    )(x_pad, w_pad, c_pad)

    return out[:B, :O]


def init_params(key, n_feature, n_hidden, n_output):
    """Deterministic parameter init (PyTorch-style uniform bounds),
    stored already transposed to (in, out) for the kernel."""
    k1, k2, k3, k4 = jax.random.split(key, 4)
    bound1 = 1.0 / jnp.sqrt(n_feature)
    bound2 = 1.0 / jnp.sqrt(n_hidden)
    w1 = jax.random.uniform(k1, (n_feature, n_hidden), jnp.float32,
                            -bound1, bound1)
    b1 = jax.random.uniform(k2, (1, n_hidden), jnp.float32, -bound1, bound1)
    w2 = jax.random.uniform(k3, (n_hidden, n_output), jnp.float32,
                            -bound2, bound2)
    b2 = jax.random.uniform(k4, (1, n_output), jnp.float32, -bound2, bound2)
    return w1, b1, w2, b2


if __name__ == "__main__":
    n_feature, n_hidden, n_output = 32, 64, 16
    batch = 512  # exercises the batch-tiled grid (2 steps of 256 rows)

    key = jax.random.PRNGKey(0)
    k_x, k_p = jax.random.split(key)
    x = jax.random.normal(k_x, (batch, n_feature), jnp.float32)
    w1, b1, w2, b2 = init_params(k_p, n_feature, n_hidden, n_output)

    out = net_forward(x, w1, b1, w2, b2)
    out = jax.block_until_ready(out)

    # Pure-JAX f32 reference of the original two-layer forward.
    ref = (x @ w1 + b1) @ w2 + b2
    assert out.shape == (batch, n_output)
    # bf16 MXU operands with f32 accumulation: small, bounded rounding error.
    assert jnp.allclose(out, ref, atol=1e-2, rtol=1e-2), float(
        jnp.max(jnp.abs(out - ref)))

    print("KERNEL_OK")
</pallas_src>

<mosaic_0001>
module attributes {stable_mosaic.version = 11 : i64} {
  func.func @_fused_mlp_kernel(%arg0: i32, %arg1: memref<256x32xf32, #tpu.memory_space<vmem>>, %arg2: memref<32x128xbf16, #tpu.memory_space<vmem>>, %arg3: memref<1x128xf32, #tpu.memory_space<vmem>>, %arg4: memref<256x128xf32, #tpu.memory_space<vmem>>) attributes {dimension_semantics = [#tpu.dimension_semantics<parallel>], iteration_bounds = array<i64: 2>, scalar_prefetch = 0 : i64, scratch_operands = 0 : i64, tpu.core_type = #tpu.core_type<tc>, window_params = [{transform_indices = @transform_0, window_bounds = array<i64: 256, 32>}, {pipeline_mode = #tpu.pipeline_mode<synchronous>, transform_indices = @transform_1, window_bounds = array<i64: 32, 128>}, {pipeline_mode = #tpu.pipeline_mode<synchronous>, transform_indices = @transform_2, window_bounds = array<i64: 1, 128>}, {transform_indices = @transform_3, window_bounds = array<i64: 256, 128>}]} {
    %c0 = arith.constant 0 : index
    %c0_0 = arith.constant 0 : index
    %0 = vector.load %arg1[%c0, %c0_0] : memref<256x32xf32, #tpu.memory_space<vmem>>, vector<256x32xf32>
    %1 = arith.truncf %0 : vector<256x32xf32> to vector<256x32xbf16>
    %c0_1 = arith.constant 0 : index
    %c0_2 = arith.constant 0 : index
    %2 = vector.load %arg2[%c0_1, %c0_2] : memref<32x128xbf16, #tpu.memory_space<vmem>>, vector<32x128xbf16>
    %cst = arith.constant dense<0.000000e+00> : vector<256x128xf32>
    %3 = tpu.matmul %1, %2, %cst {dimension_numbers = #tpu.dot_dimension_numbers<[1], [0], [0], [1], [0, 0, 1, 1], [], []>} : vector<256x32xbf16>, vector<32x128xbf16>, vector<256x128xf32> -> vector<256x128xf32>
    %c0_3 = arith.constant 0 : index
    %c0_4 = arith.constant 0 : index
    %4 = vector.load %arg3[%c0_3, %c0_4] : memref<1x128xf32, #tpu.memory_space<vmem>>, vector<1x128xf32>
    %5 = vector.broadcast %4 : vector<1x128xf32> to vector<256x128xf32>
    %6 = arith.addf %3, %5 : vector<256x128xf32>
    %c0_5 = arith.constant 0 : index
    %c0_6 = arith.constant 0 : index
    %7 = vector.load %arg4[%c0_5, %c0_6] : memref<256x128xf32, #tpu.memory_space<vmem>>, vector<256x128xf32>
    tpu.vector_store %arg4[%c0_5, %c0_6], %6 {strides = array<i32>} : memref<256x128xf32, #tpu.memory_space<vmem>>, vector<256x128xf32>,
    return
  }
  func.func @transform_0(%arg0: i32) -> (i32, i32) {
    %c0_i32 = arith.constant 0 : i32
    %c0_i32_0 = arith.constant 0 : i32
    return %arg0, %c0_i32 : i32, i32
  }
  func.func @transform_1(%arg0: i32) -> (i32, i32) {
    %c0_i32 = arith.constant 0 : i32
    %c0_i32_0 = arith.constant 0 : i32
    %c0_i32_1 = arith.constant 0 : i32
    return %c0_i32, %c0_i32_0 : i32, i32
  }
  func.func @transform_2(%arg0: i32) -> (i32, i32) {
    %c0_i32 = arith.constant 0 : i32
    %c0_i32_0 = arith.constant 0 : i32
    %c0_i32_1 = arith.constant 0 : i32
    return %c0_i32, %c0_i32_0 : i32, i32
  }
  func.func @transform_3(%arg0: i32) -> (i32, i32) {
    %c0_i32 = arith.constant 0 : i32
    %c0_i32_0 = arith.constant 0 : i32
    return %arg0, %c0_i32 : i32, i32
  }
}

</mosaic_0001>

<llo_original>
// kernel: tpu_custom_call.1
$region0: #{tpu_custom_call.1}
  #allocation0 [shape = 'u32[]', space=smem, size = 0x4, offset = 0x4, fixed_abs, tag = 'smem constant byte address 0x4 - core index']
  #allocation1 [shape = 'u32[144,128]{1,0:T(1,128)}', space=vmem, size = 0x12000, scoped, tag = 'internal scratch']
  %s0 = inlined_call_operand.vmem [shape: f32[512,32], index: 0, kind: input, shape index: {}]
  %s1 = inlined_call_operand.vmem [shape: bf16[32,128], index: 1, kind: input, shape index: {}]
  %s2 = inlined_call_operand.vmem [shape: f32[1,128], index: 2, kind: input, shape index: {}]
  %s3 = inlined_call_operand.hbm [shape: f32[512,128], index: 3, kind: output, shape index: {}]
  %s4 = sld [smem:[#allocation0]]
  $region45: #{tpu_custom_call.1} parent=0
    _
  %s6 = ssub.s32 1, %s4
  %s7 = scalar_select 0, %s6, %s4
  $region1: #{tpu_custom_call.1} parent=0
    #allocation2 [shape = 'u8[262144]{0}', space=vmem, size = 0x40000, scoped, tag = 'output window, operand 0']
    #allocation3 [shape = 's32[2]{0}', space=sflag, size = 0x8, scoped, tag = 'scoped memory for tpu_custom_call.1']
    %8 = vsyncpa [#allocation3], 0
    %s9 = scalar_lea.sflag [#allocation3], 1
    %10 = vsyncpa %s9, 0
    loop: start=0, step=1, limit=4
    $region2: #{tpu_custom_call.1} parent=1 // loop_pre_header
      _
    $region3: #{tpu_custom_call.1} parent=1 // loop_header
      %s12 = sphi 0, %s16
      %p13 = scmp.ge.s32.totalorder %s12, 4
      %s22 = sphi 0, %s24
      %s25 = sphi 0, %s22
      %s26 = sphi 0, %s25
      %s42 = sphi 0, %s26
      %s46 = sphi 0, %s46
      %s48 = sphi 0, %s46
      %s49 = sphi 0, %s48
      %s63 = sphi 0, %s49
      %s67 = sphi 0, %s67
      %s69 = sphi 0, %s67
      %s70 = sphi 0, %s69
      %s84 = sphi 0, %s70
      %s90 = sphi 0, %s92
      %s93 = sphi 0, %s90
      %s94 = sphi 0, %s93
      %s110 = sphi 0, %s94
    $region4: #{tpu_custom_call.1} parent=1 // loop_header_branch
      %15 = sbr.rel (%p13) target = $region8
    $region5: #{tpu_custom_call.1} parent=1 // loop_body
      %s17 = ssub.s32 %s12, 1
      %s18 = ssub.s32 %s12, 2
      %s19 = sadd.s32 %s12, 1
      %s20 = ssub.s32 %s12, %s19
      %p21 = scmp.eq.s32.totalorder %s20, 0
      %s23 = sadd.s32 %s22, 1
      %s24 = scalar_select %p21, %s22, %s23
      %p27 = pneg %p21
      %p28 = scmp.eq.s32.totalorder %s12, 1
      %p29 = por %p27, %p28
      %p30 = scmp.ne.s32.totalorder %s22, %s25
      %p31 = scmp.eq.s32.totalorder %s12, 0
      %p32 = por %p30, %p31
      %p33 = scmp.ne.s32.totalorder %s22, %s25
      %p34 = scmp.eq.s32.totalorder %s17, 1
      %p35 = por %p33, %p34
      %p36 = scmp.ne.s32.totalorder %s25, %s26
      %p37 = scmp.eq.s32.totalorder %s17, 0
      %p38 = por %p36, %p37
      %p39 = scmp.ne.s32.totalorder %s25, %s26
      %p40 = scmp.eq.s32.totalorder %s18, 1
      %p41 = por %p39, %p40
      %p43 = scmp.ne.s32.totalorder %s26, %s42
      %p44 = scmp.eq.s32.totalorder %s18, 0
      %p45 = por %p43, %p44
      %s47 = sadd.s32 %s46, 1
      %p50 = scmp.eq.s32.totalorder %s12, 1
      %p51 = scmp.ne.s32.totalorder %s46, %s48
      %p52 = scmp.eq.s32.totalorder %s12, 0
      %p53 = por %p51, %p52
      %p54 = scmp.ne.s32.totalorder %s46, %s48
      %p55 = scmp.eq.s32.totalorder %s17, 1
      %p56 = por %p54, %p55
      %p57 = scmp.ne.s32.totalorder %s48, %s49
      %p58 = scmp.eq.s32.totalorder %s17, 0
      %p59 = por %p57, %p58
      %p60 = scmp.ne.s32.totalorder %s48, %s49
      %p61 = scmp.eq.s32.totalorder %s18, 1
      %p62 = por %p60, %p61
      %p64 = scmp.ne.s32.totalorder %s49, %s63
      %p65 = scmp.eq.s32.totalorder %s18, 0
      %p66 = por %p64, %p65
      %s68 = sadd.s32 %s67, 1
      %p71 = scmp.eq.s32.totalorder %s12, 1
      %p72 = scmp.ne.s32.totalorder %s67, %s69
      %p73 = scmp.eq.s32.totalorder %s12, 0
      %p74 = por %p72, %p73
      %p75 = scmp.ne.s32.totalorder %s67, %s69
      %p76 = scmp.eq.s32.totalorder %s17, 1
      %p77 = por %p75, %p76
      %p78 = scmp.ne.s32.totalorder %s69, %s70
      %p79 = scmp.eq.s32.totalorder %s17, 0
      %p80 = por %p78, %p79
      %p81 = scmp.ne.s32.totalorder %s69, %s70
      %p82 = scmp.eq.s32.totalorder %s18, 1
      %p83 = por %p81, %p82
      %p85 = scmp.ne.s32.totalorder %s70, %s84
      %p86 = scmp.eq.s32.totalorder %s18, 0
      %p87 = por %p85, %p86
      %s88 = ssub.s32 %s12, %s19
      %p89 = scmp.eq.s32.totalorder %s88, 0
      %s91 = sadd.s32 %s90, 1
      %s92 = scalar_select %p89, %s90, %s91
      %p95 = pneg %p89
      %p96 = scmp.eq.s32.totalorder %s12, 1
      %p97 = por %p95, %p96
      %p98 = scmp.ne.s32.totalorder %s90, %s93
      %p99 = scmp.eq.s32.totalorder %s12, 0
      %p100 = por %p98, %p99
      %p101 = scmp.ne.s32.totalorder %s90, %s93
      %p102 = scmp.eq.s32.totalorder %s17, 1
      %p103 = por %p101, %p102
      %p104 = scmp.ne.s32.totalorder %s93, %s94
      %p105 = scmp.eq.s32.totalorder %s17, 0
      %p106 = por %p104, %p105
      %p107 = scmp.ne.s32.totalorder %s93, %s94
      %p108 = scmp.eq.s32.totalorder %s18, 1
      %p109 = por %p107, %p108
      %p111 = scmp.ne.s32.totalorder %s94, %s110
      %p112 = scmp.eq.s32.totalorder %s18, 0
      %p113 = por %p111, %p112
      %p114 = scmp.le.s32.totalorder 1, %s12
      %p115 = scmp.lt.s32.totalorder %s12, 3
      %p116 = pnand %p114, %p115
      %p117 = pneg %p116
      // Predicated region
      $region9: #{tpu_custom_call.1} parent=5 // pred_check
        _
      $region10: #{tpu_custom_call.1} parent=5 // pred_check_branch
        %119 = sbr.rel (%p116) target = $region12
      $region11: #{tpu_custom_call.1} parent=5 // pred_region
        %s120 = ssub.s32 %s12, 1
        // Predicated region
        $region13: #{tpu_custom_call.1} parent=11 // pred_check
          %p121 = pneg %p59
        $region14: #{tpu_custom_call.1} parent=11 // pred_check_branch
          %123 = sbr.rel (%p121) target = $region16
        $region15: #{tpu_custom_call.1} parent=11 // pred_region
          _
        $region16: #{tpu_custom_call.1} parent=11 // pred_fallthru
          _
        // Predicated region
        $region17: #{tpu_custom_call.1} parent=11 // pred_check
          %p124 = pneg %p80
        $region18: #{tpu_custom_call.1} parent=11 // pred_check_branch
          %126 = sbr.rel (%p124) target = $region20
        $region19: #{tpu_custom_call.1} parent=11 // pred_region
          _
        $region20: #{tpu_custom_call.1} parent=11 // pred_fallthru
          _
      $region12: #{tpu_custom_call.1} parent=5 // pred_fallthru
        _
      %p127 = scmp.lt.s32.totalorder %s12, 2
      // Predicated region
      $region21: #{tpu_custom_call.1} parent=5 // pred_check
        %p128 = pneg %p127
      $region22: #{tpu_custom_call.1} parent=5 // pred_check_branch
        %130 = sbr.rel (%p128) target = $region24
      $region23: #{tpu_custom_call.1} parent=5 // pred_region
        // Predicated region
        $region25: #{tpu_custom_call.1} parent=23 // pred_check
          %p131 = pneg %p32
        $region26: #{tpu_custom_call.1} parent=23 // pred_check_branch
          %133 = sbr.rel (%p131) target = $region28
        $region27: #{tpu_custom_call.1} parent=23 // pred_region
          %s134 = smul.u32 32, %s12
          %p135 = scmp.lt.s32.totalorder %s134, 63
          %s136 = scalar_select %p135, %s134, 63
          %s137 = smul.addr %s136, 8
          %s138 = scalar_lea.vmem %s0, %s137
          %s139 = smul.u32 32, %s12
        $region28: #{tpu_custom_call.1} parent=23 // pred_fallthru
          _
      $region24: #{tpu_custom_call.1} parent=5 // pred_fallthru
        _
      %p140 = scmp.le.s32.totalorder 1, %s12
      %p141 = scmp.lt.s32.totalorder %s12, 3
      %p142 = pnand %p140, %p141
      %p143 = pneg %p142
      // Predicated region
      $region29: #{tpu_custom_call.1} parent=5 // pred_check
        _
      $region30: #{tpu_custom_call.1} parent=5 // pred_check_branch
        %145 = sbr.rel (%p142) target = $region32
      $region31: #{tpu_custom_call.1} parent=5 // pred_region
        %s146 = ssub.s32 %s12, 1
        %s147 = smul.u32 32, %s17
        %p148 = scmp.lt.s32.totalorder %s147, 63
        %s149 = scalar_select %p148, %s147, 63
        %s150 = smul.addr %s149, 8
        %s151 = scalar_lea.vmem %s0, %s150
        %p152 = pneg %p38
        %p153 = pneg %p35
        %p154 = pneg %p59
        %p155 = pneg %p56
        %p156 = pneg %p80
        %p157 = pneg %p77
        %p158 = pneg %p106
        %p159 = pneg %p103
        %s160 = sand.u32 %s93, 1
        %s161 = scalar_lea.sflag [#allocation3], %s160
        %s162 = sand.u32 %s93, 1
        %s163 = smul.addr %s162, 256
        %s164 = scalar_lea.vmem [#allocation2], %s163
        %s165 = smul.u32 32, %s17
        %p166 = scmp.lt.s32.totalorder %s165, 63
        %s167 = scalar_select %p166, %s165, 63
        %s168 = smul.addr %s167, 8
        %s169 = scalar_lea.vmem %s0, %s168
        %s170 = smul.u32 32, %s17
        %s171 = smul.u32 32, %s17
        %v173 = vld [vmem:[%s169] sm:$0xff]
        %v174 = vld [vmem:[%s169 + $0x8] sm:$0xff]
        %v175 = vld [vmem:[%s169 + $0x10] sm:$0xff]
        %v176 = vld [vmem:[%s169 + $0x18] sm:$0xff]
        %v177 = vld [vmem:[%s169 + $0x20] sm:$0xff]
        %v178 = vld [vmem:[%s169 + $0x28] sm:$0xff]
        %v179 = vld [vmem:[%s169 + $0x30] sm:$0xff]
        %v180 = vld [vmem:[%s169 + $0x38] sm:$0xff]
        %v181 = vld [vmem:[%s169 + $0x40] sm:$0xff]
        %v182 = vld [vmem:[%s169 + $0x48] sm:$0xff]
        %v183 = vld [vmem:[%s169 + $0x50] sm:$0xff]
        %v184 = vld [vmem:[%s169 + $0x58] sm:$0xff]
        %v185 = vld [vmem:[%s169 + $0x60] sm:$0xff]
        %v186 = vld [vmem:[%s169 + $0x68] sm:$0xff]
        %v187 = vld [vmem:[%s169 + $0x70] sm:$0xff]
        %v188 = vld [vmem:[%s169 + $0x78] sm:$0xff]
        %v189 = vld [vmem:[%s169 + $0x80] sm:$0xff]
        %v190 = vld [vmem:[%s169 + $0x88] sm:$0xff]
        %v191 = vld [vmem:[%s169 + $0x90] sm:$0xff]
        %v192 = vld [vmem:[%s169 + $0x98] sm:$0xff]
        %v193 = vld [vmem:[%s169 + $0xa0] sm:$0xff]
        %v194 = vld [vmem:[%s169 + $0xa8] sm:$0xff]
        %v195 = vld [vmem:[%s169 + $0xb0] sm:$0xff]
        %v196 = vld [vmem:[%s169 + $0xb8] sm:$0xff]
        %v197 = vld [vmem:[%s169 + $0xc0] sm:$0xff]
        %v198 = vld [vmem:[%s169 + $0xc8] sm:$0xff]
        %v199 = vld [vmem:[%s169 + $0xd0] sm:$0xff]
        %v200 = vld [vmem:[%s169 + $0xd8] sm:$0xff]
        %v201 = vld [vmem:[%s169 + $0xe0] sm:$0xff]
        %v202 = vld [vmem:[%s169 + $0xe8] sm:$0xff]
        %v203 = vld [vmem:[%s169 + $0xf0] sm:$0xff]
        %v204 = vld [vmem:[%s169 + $0xf8] sm:$0xff]
        %v205 = vpack.c.bf16 %v174, %v173
        %v206 = vpack.c.bf16 %v176, %v175
        %v207 = vpack.c.bf16 %v178, %v177
        %v208 = vpack.c.bf16 %v180, %v179
        %v209 = vpack.c.bf16 %v182, %v181
        %v210 = vpack.c.bf16 %v184, %v183
        %v211 = vpack.c.bf16 %v186, %v185
        %v212 = vpack.c.bf16 %v188, %v187
        %v213 = vpack.c.bf16 %v190, %v189
        %v214 = vpack.c.bf16 %v192, %v191
        %v215 = vpack.c.bf16 %v194, %v193
        %v216 = vpack.c.bf16 %v196, %v195
        %v217 = vpack.c.bf16 %v198, %v197
        %v218 = vpack.c.bf16 %v200, %v199
        %v219 = vpack.c.bf16 %v202, %v201
        %v220 = vpack.c.bf16 %v204, %v203
        %v221 = vld [vmem:[%s1] sm:$0xf]
        %v222 = vld [vmem:[%s1 + $0x4] sm:$0xf]
        %v223 = vld [vmem:[%s1 + $0x8] sm:$0xf]
        %v224 = vld [vmem:[%s1 + $0xc] sm:$0xf]
        %v225 = vld [vmem:[%s2] sm:$0x1]
        %v227 = vlaneseq
        %v228 = vshrl.u32 %v227, 7
        %v229 = vsub.s32 0, %v228
        %v230 = vrot.slane %v225, %v229
        %v236 = vunpack.c.l.b16 %v221
        %v237 = vunpack.c.l.b16 %v222
        %v238 = vunpack.c.l.b16 %v223
        %v239 = vunpack.c.l.b16 %v224
        %v240 = vpack.c.b16 %v237, %v236
        %v241 = vpack.c.b16 %v239, %v238
        %vm244 = vcmask 261120
        %v246 = vsel %vm244, %v205, 0
        %v249 = vsel %vm244, %v206, 0
        %v252 = vsel %vm244, %v207, 0
        %v255 = vsel %vm244, %v208, 0
        %v258 = vsel %vm244, %v209, 0
        %v261 = vsel %vm244, %v210, 0
        %v264 = vsel %vm244, %v211, 0
        %v267 = vsel %vm244, %v212, 0
        %v270 = vsel %vm244, %v213, 0
        %v273 = vsel %vm244, %v214, 0
        %v276 = vsel %vm244, %v215, 0
        %v279 = vsel %vm244, %v216, 0
        %v282 = vsel %vm244, %v217, 0
        %v285 = vsel %vm244, %v218, 0
        %v288 = vsel %vm244, %v219, 0
        %v291 = vsel %vm244, %v220, 0
        %293 = vmatprep.subr.bf16.mxu0 0
        %294 = vmatpush1.bf16.msra.mxu0 0
        %295 = vmatprep.subr.bf16.mxu0 0
        %296 = vmatpush1.bf16.msra.mxu0 0
        %297 = vmatprep.subr.bf16.mxu0 0
        %298 = vmatpush1.bf16.msra.mxu0 0
        %299 = vmatprep.subr.bf16.mxu0 0
        %300 = vmatpush1.bf16.msra.mxu0 0
        %301 = vmatprep.subr.bf16.mxu0 0
        %302 = vmatpush1.bf16.msra.mxu0 0
        %303 = vmatprep.subr.bf16.mxu0 0
        %304 = vmatpush1.bf16.msra.mxu0 0
        %305 = vmatprep.subr.bf16.mxu0 0
        %306 = vmatpush1.bf16.msra.mxu0 %v241
        %307 = vmatprep.subr.bf16.mxu0 0
        %308 = vmatpush1.bf16.msra.mxu0 %v240
        %309 = vmatprep.subr.bf16.mxu0 0
        %310 = vmatpush2.bf16.msra.mxu0 0
        %311 = vmatprep.subr.bf16.mxu0 0
        %312 = vmatpush2.bf16.msra.mxu0 0
        %313 = vmatprep.subr.bf16.mxu0 0
        %314 = vmatpush2.bf16.msra.mxu0 0
        %315 = vmatprep.subr.bf16.mxu0 0
        %316 = vmatpush2.bf16.msra.mxu0 0
        %317 = vmatprep.subr.bf16.mxu0 0
        %318 = vmatpush2.bf16.msra.mxu0 0
        %319 = vmatprep.subr.bf16.mxu0 0
        %320 = vmatpush2.bf16.msra.mxu0 0
        %321 = vmatprep.subr.bf16.mxu0 0
        %322 = vmatpush2.bf16.msra.mxu0 0
        %323 = vmatprep.subr.bf16.mxu0 0
        %324 = vmatpush2.bf16.msra.mxu0 0
        %325 = vmatprep.mubr.bf16.mxu0 0
        %326 = vmatmul.mubr.bf16.gmra.mxu0 %v246
        %v327 = vpop.f32.mrf.mxu0
        %v328 = vadd.f32 %v230, %v327
        %v329 = vpop.f32.mrf.mxu0
        %v330 = vpop.f32.mrf.mxu0
        %v331 = vadd.f32 %v230, %v330
        %v332 = vpop.f32.mrf.mxu0
        %333 = vmatprep.mubr.bf16.mxu0 0
        %334 = vmatmul.mubr.bf16.gmra.mxu0 %v249
        %v335 = vpop.f32.mrf.mxu0
        %v336 = vadd.f32 %v230, %v335
        %v337 = vpop.f32.mrf.mxu0
        %v338 = vpop.f32.mrf.mxu0
        %v339 = vadd.f32 %v230, %v338
        %v340 = vpop.f32.mrf.mxu0
        %341 = vmatprep.mubr.bf16.mxu0 0
        %342 = vmatmul.mubr.bf16.gmra.mxu0 %v252
        %v343 = vpop.f32.mrf.mxu0
        %v344 = vadd.f32 %v230, %v343
        %v345 = vpop.f32.mrf.mxu0
        %v346 = vpop.f32.mrf.mxu0
        %v347 = vadd.f32 %v230, %v346
        %v348 = vpop.f32.mrf.mxu0
        %349 = vmatprep.mubr.bf16.mxu0 0
        %350 = vmatmul.mubr.bf16.gmra.mxu0 %v255
        %v351 = vpop.f32.mrf.mxu0
        %v352 = vadd.f32 %v230, %v351
        %v353 = vpop.f32.mrf.mxu0
        %v354 = vpop.f32.mrf.mxu0
        %v355 = vadd.f32 %v230, %v354
        %v356 = vpop.f32.mrf.mxu0
        %357 = vmatprep.mubr.bf16.mxu0 0
        %358 = vmatmul.mubr.bf16.gmra.mxu0 %v258
        %v359 = vpop.f32.mrf.mxu0
        %v360 = vadd.f32 %v230, %v359
        %v361 = vpop.f32.mrf.mxu0
        %v362 = vpop.f32.mrf.mxu0
        %v363 = vadd.f32 %v230, %v362
        %v364 = vpop.f32.mrf.mxu0
        %365 = vmatprep.mubr.bf16.mxu0 0
        %366 = vmatmul.mubr.bf16.gmra.mxu0 %v261
        %v367 = vpop.f32.mrf.mxu0
        %v368 = vadd.f32 %v230, %v367
        %v369 = vpop.f32.mrf.mxu0
        %v370 = vpop.f32.mrf.mxu0
        %v371 = vadd.f32 %v230, %v370
        %v372 = vpop.f32.mrf.mxu0
        %373 = vmatprep.mubr.bf16.mxu0 0
        %374 = vmatmul.mubr.bf16.gmra.mxu0 %v264
        %v375 = vpop.f32.mrf.mxu0
        %v376 = vadd.f32 %v230, %v375
        %v377 = vpop.f32.mrf.mxu0
        %v378 = vpop.f32.mrf.mxu0
        %v379 = vadd.f32 %v230, %v378
        %v380 = vpop.f32.mrf.mxu0
        %381 = vmatprep.mubr.bf16.mxu0 0
        %382 = vmatmul.mubr.bf16.gmra.mxu0 %v267
        %v383 = vpop.f32.mrf.mxu0
        %v384 = vadd.f32 %v230, %v383
        %v385 = vpop.f32.mrf.mxu0
        %v386 = vpop.f32.mrf.mxu0
        %v387 = vadd.f32 %v230, %v386
        %v388 = vpop.f32.mrf.mxu0
        %389 = vmatprep.mubr.bf16.mxu0 0
        %390 = vmatmul.mubr.bf16.gmra.mxu0 %v270
        %v391 = vpop.f32.mrf.mxu0
        %v392 = vadd.f32 %v230, %v391
        %v393 = vpop.f32.mrf.mxu0
        %v394 = vpop.f32.mrf.mxu0
        %v395 = vadd.f32 %v230, %v394
        %v396 = vpop.f32.mrf.mxu0
        %397 = vmatprep.mubr.bf16.mxu0 0
        %398 = vmatmul.mubr.bf16.gmra.mxu0 %v273
        %v399 = vpop.f32.mrf.mxu0
        %v400 = vadd.f32 %v230, %v399
        %v401 = vpop.f32.mrf.mxu0
        %v402 = vpop.f32.mrf.mxu0
        %v403 = vadd.f32 %v230, %v402
        %v404 = vpop.f32.mrf.mxu0
        %405 = vmatprep.mubr.bf16.mxu0 0
        %406 = vmatmul.mubr.bf16.gmra.mxu0 %v276
        %v407 = vpop.f32.mrf.mxu0
        %v408 = vadd.f32 %v230, %v407
        %v409 = vpop.f32.mrf.mxu0
        %v410 = vpop.f32.mrf.mxu0
        %v411 = vadd.f32 %v230, %v410
        %v412 = vpop.f32.mrf.mxu0
        %413 = vmatprep.mubr.bf16.mxu0 0
        %414 = vmatmul.mubr.bf16.gmra.mxu0 %v279
        %v415 = vpop.f32.mrf.mxu0
        %v416 = vadd.f32 %v230, %v415
        %v417 = vpop.f32.mrf.mxu0
        %v418 = vpop.f32.mrf.mxu0
        %v419 = vadd.f32 %v230, %v418
        %v420 = vpop.f32.mrf.mxu0
        %421 = vmatprep.mubr.bf16.mxu0 0
        %422 = vmatmul.mubr.bf16.gmra.mxu0 %v282
        %v423 = vpop.f32.mrf.mxu0
        %v424 = vadd.f32 %v230, %v423
        %v425 = vpop.f32.mrf.mxu0
        %v426 = vpop.f32.mrf.mxu0
        %v427 = vadd.f32 %v230, %v426
        %v428 = vpop.f32.mrf.mxu0
        %429 = vmatprep.mubr.bf16.mxu0 0
        %430 = vmatmul.mubr.bf16.gmra.mxu0 %v285
        %v431 = vpop.f32.mrf.mxu0
        %v432 = vadd.f32 %v230, %v431
        %v433 = vpop.f32.mrf.mxu0
        %v434 = vpop.f32.mrf.mxu0
        %v435 = vadd.f32 %v230, %v434
        %v436 = vpop.f32.mrf.mxu0
        %437 = vmatprep.mubr.bf16.mxu0 0
        %438 = vmatmul.mubr.bf16.gmra.mxu0 %v288
        %v439 = vpop.f32.mrf.mxu0
        %v440 = vadd.f32 %v230, %v439
        %v441 = vpop.f32.mrf.mxu0
        %v442 = vpop.f32.mrf.mxu0
        %v443 = vadd.f32 %v230, %v442
        %v444 = vpop.f32.mrf.mxu0
        %445 = vmatprep.mubr.bf16.mxu0 0
        %446 = vmatmul.mubr.bf16.gmra.mxu0 %v291
        %v447 = vpop.f32.mrf.mxu0
        %v448 = vadd.f32 %v230, %v447
        %v449 = vpop.f32.mrf.mxu0
        %v450 = vpop.f32.mrf.mxu0
        %v451 = vadd.f32 %v230, %v450
        %v452 = vpop.f32.mrf.mxu0
        %453 = vdwg.mxu0
        %454 = vst [vmem:[%s164] sm:$0xff] %v328
        %455 = vst [vmem:[%s164 + $0x8] sm:$0xff] %v331
        %456 = vst [vmem:[%s164 + $0x10] sm:$0xff] %v336
        %457 = vst [vmem:[%s164 + $0x18] sm:$0xff] %v339
        %458 = vst [vmem:[%s164 + $0x20] sm:$0xff] %v344
        %459 = vst [vmem:[%s164 + $0x28] sm:$0xff] %v347
        %460 = vst [vmem:[%s164 + $0x30] sm:$0xff] %v352
        %461 = vst [vmem:[%s164 + $0x38] sm:$0xff] %v355
        %462 = vst [vmem:[%s164 + $0x40] sm:$0xff] %v360
        %463 = vst [vmem:[%s164 + $0x48] sm:$0xff] %v363
        %464 = vst [vmem:[%s164 + $0x50] sm:$0xff] %v368
        %465 = vst [vmem:[%s164 + $0x58] sm:$0xff] %v371
        %466 = vst [vmem:[%s164 + $0x60] sm:$0xff] %v376
        %467 = vst [vmem:[%s164 + $0x68] sm:$0xff] %v379
        %468 = vst [vmem:[%s164 + $0x70] sm:$0xff] %v384
        %469 = vst [vmem:[%s164 + $0x78] sm:$0xff] %v387
        %470 = vst [vmem:[%s164 + $0x80] sm:$0xff] %v392
        %471 = vst [vmem:[%s164 + $0x88] sm:$0xff] %v395
        %472 = vst [vmem:[%s164 + $0x90] sm:$0xff] %v400
        %473 = vst [vmem:[%s164 + $0x98] sm:$0xff] %v403
        %474 = vst [vmem:[%s164 + $0xa0] sm:$0xff] %v408
        %475 = vst [vmem:[%s164 + $0xa8] sm:$0xff] %v411
        %476 = vst [vmem:[%s164 + $0xb0] sm:$0xff] %v416
        %477 = vst [vmem:[%s164 + $0xb8] sm:$0xff] %v419
        %478 = vst [vmem:[%s164 + $0xc0] sm:$0xff] %v424
        %479 = vst [vmem:[%s164 + $0xc8] sm:$0xff] %v427
        %480 = vst [vmem:[%s164 + $0xd0] sm:$0xff] %v432
        %481 = vst [vmem:[%s164 + $0xd8] sm:$0xff] %v435
        %482 = vst [vmem:[%s164 + $0xe0] sm:$0xff] %v440
        %483 = vst [vmem:[%s164 + $0xe8] sm:$0xff] %v443
        %484 = vst [vmem:[%s164 + $0xf0] sm:$0xff] %v448
        %485 = vst [vmem:[%s164 + $0xf8] sm:$0xff] %v451
        %s486 = sand.u32 %s93, 1
        %s487 = scalar_lea.sflag [#allocation3], %s486
        %s488 = sand.u32 %s93, 1
        %s489 = smul.addr %s488, 256
        %s490 = scalar_lea.vmem [#allocation2], %s489
        // Predicated region
        $region33: #{tpu_custom_call.1} parent=31 // pred_check
          %p491 = pneg %p103
        $region34: #{tpu_custom_call.1} parent=31 // pred_check_branch
          %493 = sbr.rel (%p491) target = $region36
        $region35: #{tpu_custom_call.1} parent=31 // pred_region
          %s494 = smul.u32 32, %s17
          %s496 = ssub.s32 4096, 4096
          %497 = vsyncadd %s487, %s496
          %s498 = smul.addr %s494, 128
          %s499 = scalar_lea.hbm %s3, %s498
          %s500 = sshll.u32 %s490, 4
          %s501 = int_to_ptr.vmem [resolvable:$true] %s500
          %506 = dma.vmem_to_hbm [thread:$0]  %s501, 4096, %s499, %s487, 128, 128, 8
        $region36: #{tpu_custom_call.1} parent=31 // pred_fallthru
          _
      $region32: #{tpu_custom_call.1} parent=5 // pred_fallthru
        _
      %p507 = scmp.le.s32.totalorder 2, %s12
      // Predicated region
      $region37: #{tpu_custom_call.1} parent=5 // pred_check
        %p508 = pneg %p507
      $region38: #{tpu_custom_call.1} parent=5 // pred_check_branch
        %510 = sbr.rel (%p508) target = $region40
      $region39: #{tpu_custom_call.1} parent=5 // pred_region
        %s511 = ssub.s32 %s12, 2
        // Predicated region
        $region41: #{tpu_custom_call.1} parent=39 // pred_check
          %p512 = pneg %p109
        $region42: #{tpu_custom_call.1} parent=39 // pred_check_branch
          %514 = sbr.rel (%p512) target = $region44
        $region43: #{tpu_custom_call.1} parent=39 // pred_region
          %s515 = sand.u32 %s94, 1
          %s516 = scalar_lea.sflag [#allocation3], %s515
          %s517 = sand.u32 %s94, 1
          %s518 = smul.addr %s517, 256
          %s519 = scalar_lea.vmem [#allocation2], %s518
          %520 = dma.done %s516, 4096
        $region44: #{tpu_custom_call.1} parent=39 // pred_fallthru
          _
      $region40: #{tpu_custom_call.1} parent=5 // pred_fallthru
        _
    $region6: #{tpu_custom_call.1} parent=1 // loop_footer
      %s16 = sadd.s32 1, %s12
    $region7: #{tpu_custom_call.1} parent=1 // loop_footer_branch
      %11 = sbr.rel target = $region3
    $region8: #{tpu_custom_call.1} parent=1 // loop_exit
      _
    %521 = vsyncpa [#allocation3], 1
    %s522 = scalar_lea.sflag [#allocation3], 1
    %523 = vsyncpa %s522, 1

</llo_original>
